<compile_context>
chip_gen: v7x
topology: tpu7x:2x2x1
jax: 0.10.0
libtpu: 0.0.40
codegen_flags: <defaults>
</compile_context>

<pallas_src>
import math
import functools

import numpy as np
import jax
import jax.numpy as jnp
from jax.experimental import pallas as pl
from jax.experimental.pallas import tpu as pltpu

NUM_HARMONICS = 50
A0_INIT = 42.8742
A_N_INIT = [22.52177631, -14.36855749, -15.46172335, -13.80045632, -7.25623712,
            -3.29460343, -0.89431335, -0.43939094, -0.54756908, -0.77002806,
            -0.7294812, -0.73489638, -0.62724951, -0.57507896, -0.34530626,
            -0.21673895, -0.20965273, -0.26026577, -0.20969586, -0.24222277,
            -0.17879291, -0.11930541, -0.15606102, -0.15482003, -0.12276921,
            -0.17289476, -0.07536781, -0.06925928, -0.08416083, -0.05711419,
            -0.04268535, -0.09427819, -0.07077185, -0.06556709, -0.03610009,
            -0.02205418, -0.06557365, -0.06891148, -0.03277604, -0.02013158,
            -0.02870531, -0.04042139, -0.02883675, -0.0260839, -0.02797781,
            -0.02348708, -0.02043181, -0.02118805, -0.02051532, -0.01986274]
B_N_INIT = [-3.54578831e-15, 1.77289416e-15, 2.65934123e-15, 5.31868247e-15, 5.0970707e-15,
            5.54029424e-15, 3.60119125e-15, 1.10805885e-15, 0.0, 0.0,
            2.10531181e-15, 9.08608255e-15, -2.00004622e-14, -1.10805885e-15, 5.01396628e-15,
            -1.55128239e-15, -1.93910298e-15, 1.10805885e-16, -2.71474418e-15, -4.3214295e-15,
            -8.44894871e-15, -9.97252962e-15, -2.30199226e-14, 4.65384716e-15, 5.31868247e-15,
            -1.10805885e-15, 8.08882958e-15, 2.93635595e-15, 6.86996485e-15, 2.99175889e-15,
            1.66208827e-15, -1.86153886e-14, -9.69551491e-15, 3.93360891e-15, -2.29922211e-15,
            1.39061385e-14, -1.56402506e-13, -1.4404765e-15, 1.02218429e-14, -1.77843445e-14,
            5.54029424e-15, 1.93356269e-14, 1.1523812e-14, 1.20778414e-14, 1.80890607e-14,
            -6.92536779e-15, -6.23283102e-15, 1.24213397e-13, 5.64001953e-14, 2.20503711e-14]


# ----------------------------- FourierFilter kernel -----------------------------------------
def _fourier_filter_kernel(coef_ref, basis_ref, xre_ref, xim_ref, yre_ref, yim_ref):
    # filter_1d = [a0, a_n..., b_n...] @ [ones; cos; sin]  -> (1, Dh), one small MXU matmul.
    filt = jnp.dot(coef_ref[...], basis_ref[...], preferred_element_type=jnp.float32)
    # complex multiply by a real filter, broadcast over this block of projection rows
    yre_ref[...] = xre_ref[...] * filt
    yim_ref[...] = xim_ref[...] * filt


def fourier_filter(x_re, x_im, basis, coeffs):
    A, Dh = x_re.shape
    NB = basis.shape[0]
    ta = 8 if A % 8 == 0 else A                    # lane-dense (ta, Dh) projection-row blocks
    row_blk = pl.BlockSpec((ta, Dh), lambda i: (i, 0))
    return pl.pallas_call(
        _fourier_filter_kernel,
        out_shape=(jax.ShapeDtypeStruct((A, Dh), jnp.float32),
                   jax.ShapeDtypeStruct((A, Dh), jnp.float32)),
        grid=(A // ta,),
        in_specs=[pl.BlockSpec((1, NB), lambda i: (0, 0)),    # coeffs, resident
                  pl.BlockSpec((NB, Dh), lambda i: (0, 0)),   # harmonic basis, resident
                  row_blk, row_blk],
        out_specs=(row_blk, row_blk),
        compiler_params=pltpu.CompilerParams(dimension_semantics=("parallel",)),
    )(coeffs, basis, x_re, x_im)


# ------------------------- ParallelBackProjection2D + ReLU kernel ---------------------------
def _backproject_kernel(cos_ref, sin_ref, sino_ref, x_ref, y_ref, out_ref, *,
                        det_origin, inv_det_spacing, num_det, num_proj, block_rows):
    # Detector index grid: detectors on sublanes, 128-pixel chunk on lanes.
    d_idx = jax.lax.broadcasted_iota(jnp.int32, (num_det, 128), 0).astype(jnp.float32)

    @pl.loop(0, block_rows)
    def _(s):
        xc = x_ref[pl.ds(s, 1), :]                    # (1, 128) world x for this pixel chunk
        yc = y_ref[pl.ds(s, 1), :]                    # (1, 128) world y

        def angle_body(a, acc):
            ca = cos_ref[a]                           # scalars from SMEM
            sa = sin_ref[a]
            t = xc * ca + yc * sa                                        # detector coordinate
            u = (t - det_origin) * inv_det_spacing                       # continuous det index
            w = jnp.maximum(0.0, 1.0 - jnp.abs(u - d_idx))               # (D, 128) lin-interp
            row = sino_ref[pl.ds(a, 1), :]                               # (1, D) bf16 sino row
            # (1, D) @ (D, 128) on the MXU, bf16 inputs, f32 accumulation
            return acc + jnp.dot(row, w.astype(jnp.bfloat16),
                                 preferred_element_type=jnp.float32)

        acc = jax.lax.fori_loop(0, num_proj, angle_body,
                                jnp.zeros((1, 128), jnp.float32), unroll=2)
        # TODO(synk): pyro-nn's ParallelBackProjection2D may apply an angular normalization
        # constant; the plain sum over projections (canonical backprojection) is used here.
        out_ref[pl.ds(s, 1), :] = jnp.maximum(acc, 0.0)                  # fused ReLU


def parallel_backprojection_2d_relu(sino, geometry, *, block_rows=8):
    A, D = sino.shape
    H, W = geometry["volume_shape"]
    n_pix = H * W
    assert n_pix % 128 == 0, "H*W must be a multiple of 128 for the lane-dense pixel layout"
    n128 = n_pix // 128
    block_rows = min(block_rows, n128)
    assert n128 % block_rows == 0 and block_rows % 8 == 0

    # Per-pixel world coordinates, precomputed on the host (no int div/mod in the kernel),
    # laid out lane-dense as (n128, 128) matching the output layout.
    oy, ox = (float(v) for v in geometry["volume_origin"])
    sy, sx = (float(v) for v in geometry["volume_spacing"])
    p = np.arange(n_pix, dtype=np.int64)
    xw = (ox + (p % W).astype(np.float64) * sx).astype(np.float32).reshape(n128, 128)
    yw = (oy + (p // W).astype(np.float64) * sy).astype(np.float32).reshape(n128, 128)

    angles = np.asarray(geometry["angles"], dtype=np.float64)
    cos_t = np.cos(angles).astype(np.float32)          # (A,) -> SMEM
    sin_t = np.sin(angles).astype(np.float32)          # (A,) -> SMEM

    kernel = functools.partial(
        _backproject_kernel,
        det_origin=float(geometry["detector_origin"]),
        inv_det_spacing=1.0 / float(geometry["detector_spacing"]),
        num_det=D, num_proj=A, block_rows=block_rows)

    coord_blk = pl.BlockSpec((block_rows, 128), lambda i: (i, 0))
    # TODO(synk): at realistic sizes (512x512 images, 700+ angles) re-derive block_rows and the
    # resident-sinogram budget for v7x's 64 MiB VMEM and extend the grid for its two TensorCores.
    out = pl.pallas_call(
        kernel,
        out_shape=jax.ShapeDtypeStruct((n128, 128), jnp.float32),
        grid=(n128 // block_rows,),
        in_specs=[
            pl.BlockSpec(memory_space=pltpu.MemorySpace.SMEM),   # cos table
            pl.BlockSpec(memory_space=pltpu.MemorySpace.SMEM),   # sin table
            pl.BlockSpec((A, D), lambda i: (0, 0)),              # whole sinogram resident (bf16)
            coord_blk,                                           # pixel world x
            coord_blk,                                           # pixel world y
        ],
        out_specs=coord_blk,
        compiler_params=pltpu.CompilerParams(dimension_semantics=("parallel",)),
    )(jnp.asarray(cos_t), jnp.asarray(sin_t), sino.astype(jnp.bfloat16),
      jnp.asarray(xw), jnp.asarray(yw))
    return out.reshape(H, W)


# -------------------------------- full forward pass -----------------------------------------
def par_reconstruction_2d_eff(proj, params, geometry):
    A, D = proj.shape
    Dh = D // 2 + 1
    # TODO(synk): FFT/IFFT have no Pallas primitive; done with jnp.fft (XLA) in the wrapper.
    X = jnp.fft.rfft(proj.astype(jnp.float32), axis=-1, norm="ortho")    # complex64 (A, Dh)

    # Static harmonic basis at the non-negative FFT frequencies (numpy constants, not XLA ops).
    # Row 0 is all-ones so a_0 folds into the same matmul as the harmonics.
    freqs = np.fft.rfftfreq(D).astype(np.float64)[None, :]               # (1, Dh)
    n = np.arange(1, NUM_HARMONICS + 1, dtype=np.float64)[:, None]       # (NH, 1)
    basis = np.concatenate([np.ones((1, Dh)),
                            np.cos(2.0 * np.pi * n * freqs),
                            np.sin(2.0 * np.pi * n * freqs)], axis=0).astype(np.float32)
    coeffs = jnp.concatenate([params["a_0"].reshape(-1),
                              params["a_n"].reshape(-1),
                              params["b_n"].reshape(-1)]).astype(jnp.float32).reshape(1, -1)

    y_re, y_im = fourier_filter(jnp.real(X), jnp.imag(X), jnp.asarray(basis), coeffs)
    Y = jax.lax.complex(y_re, y_im)
    proj_f = jnp.fft.irfft(Y, n=D, axis=-1, norm="ortho").astype(jnp.float32)

    rco = parallel_backprojection_2d_relu(proj_f, geometry)
    return rco, proj_f


if __name__ == "__main__":
    A, D, H, W = 16, 128, 64, 64   # projections, detectors, image height, image width

    geometry = {
        "volume_shape": (H, W),
        "volume_spacing": (1.0, 1.0),
        "volume_origin": (-(H - 1) / 2.0, -(W - 1) / 2.0),
        "detector_shape": (D,),
        "detector_spacing": 1.0,
        "detector_origin": -(D - 1) / 2.0,
        "number_of_projections": A,
        "angular_range": math.pi,
        "angles": np.linspace(0.0, math.pi, A, endpoint=False),
    }
    params = {
        "a_0": jnp.asarray([A0_INIT], dtype=jnp.float32),
        "a_n": jnp.asarray(A_N_INIT, dtype=jnp.float32),
        "b_n": jnp.asarray(B_N_INIT, dtype=jnp.float32),
    }

    key = jax.random.PRNGKey(0)
    proj = jax.random.normal(key, (A, D), dtype=jnp.float32)

    rco, proj_filt = par_reconstruction_2d_eff(proj, params, geometry)
    jax.block_until_ready((rco, proj_filt))

    assert rco.shape == (H, W) and rco.dtype == jnp.float32
    assert proj_filt.shape == (A, D) and proj_filt.dtype == jnp.float32
    assert bool(jnp.all(jnp.isfinite(rco))) and bool(jnp.all(jnp.isfinite(proj_filt)))
    assert bool(jnp.all(rco >= 0.0))  # ReLU
    print("KERNEL_OK")
</pallas_src>

<mosaic_0001>
module attributes {stable_mosaic.version = 11 : i64} {
  func.func @_fourier_filter_kernel(%arg0: i32, %arg1: memref<1x101xf32, #tpu.memory_space<vmem>>, %arg2: memref<101x65xf32, #tpu.memory_space<vmem>>, %arg3: memref<8x65xf32, #tpu.memory_space<vmem>>, %arg4: memref<8x65xf32, #tpu.memory_space<vmem>>, %arg5: memref<8x65xf32, #tpu.memory_space<vmem>>, %arg6: memref<8x65xf32, #tpu.memory_space<vmem>>) attributes {dimension_semantics = [#tpu.dimension_semantics<parallel>], iteration_bounds = array<i64: 2>, scalar_prefetch = 0 : i64, scratch_operands = 0 : i64, tpu.core_type = #tpu.core_type<tc>, window_params = [{pipeline_mode = #tpu.pipeline_mode<synchronous>, transform_indices = @transform_0, window_bounds = array<i64: 1, 101>}, {pipeline_mode = #tpu.pipeline_mode<synchronous>, transform_indices = @transform_1, window_bounds = array<i64: 101, 65>}, {transform_indices = @transform_2, window_bounds = array<i64: 8, 65>}, {transform_indices = @transform_3, window_bounds = array<i64: 8, 65>}, {transform_indices = @transform_4, window_bounds = array<i64: 8, 65>}, {transform_indices = @transform_5, window_bounds = array<i64: 8, 65>}]} {
    %c0 = arith.constant 0 : index
    %c0_0 = arith.constant 0 : index
    %0 = vector.load %arg1[%c0, %c0_0] : memref<1x101xf32, #tpu.memory_space<vmem>>, vector<1x101xf32>
    %c0_1 = arith.constant 0 : index
    %c0_2 = arith.constant 0 : index
    %1 = vector.load %arg2[%c0_1, %c0_2] : memref<101x65xf32, #tpu.memory_space<vmem>>, vector<101x65xf32>
    %cst = arith.constant dense<0.000000e+00> : vector<1x65xf32>
    %2 = tpu.matmul %0, %1, %cst {dimension_numbers = #tpu.dot_dimension_numbers<[1], [0], [0], [1], [0, 0, 1, 1], [], []>} : vector<1x101xf32>, vector<101x65xf32>, vector<1x65xf32> -> vector<1x65xf32>
    %c0_3 = arith.constant 0 : index
    %c0_4 = arith.constant 0 : index
    %3 = vector.load %arg3[%c0_3, %c0_4] : memref<8x65xf32, #tpu.memory_space<vmem>>, vector<8x65xf32>
    %4 = vector.broadcast %2 : vector<1x65xf32> to vector<8x65xf32>
    %5 = arith.mulf %3, %4 : vector<8x65xf32>
    %c0_5 = arith.constant 0 : index
    %c0_6 = arith.constant 0 : index
    %6 = vector.load %arg5[%c0_5, %c0_6] : memref<8x65xf32, #tpu.memory_space<vmem>>, vector<8x65xf32>
    tpu.vector_store %arg5[%c0_5, %c0_6], %5 {strides = array<i32>} : memref<8x65xf32, #tpu.memory_space<vmem>>, vector<8x65xf32>,
    %c0_7 = arith.constant 0 : index
    %c0_8 = arith.constant 0 : index
    %7 = vector.load %arg4[%c0_7, %c0_8] : memref<8x65xf32, #tpu.memory_space<vmem>>, vector<8x65xf32>
    %8 = vector.broadcast %2 : vector<1x65xf32> to vector<8x65xf32>
    %9 = arith.mulf %7, %8 : vector<8x65xf32>
    %c0_9 = arith.constant 0 : index
    %c0_10 = arith.constant 0 : index
    %10 = vector.load %arg6[%c0_9, %c0_10] : memref<8x65xf32, #tpu.memory_space<vmem>>, vector<8x65xf32>
    tpu.vector_store %arg6[%c0_9, %c0_10], %9 {strides = array<i32>} : memref<8x65xf32, #tpu.memory_space<vmem>>, vector<8x65xf32>,
    return
  }
  func.func @transform_0(%arg0: i32) -> (i32, i32) {
    %c0_i32 = arith.constant 0 : i32
    %c0_i32_0 = arith.constant 0 : i32
    %c0_i32_1 = arith.constant 0 : i32
    return %c0_i32, %c0_i32_0 : i32, i32
  }
  func.func @transform_1(%arg0: i32) -> (i32, i32) {
    %c0_i32 = arith.constant 0 : i32
    %c0_i32_0 = arith.constant 0 : i32
    %c0_i32_1 = arith.constant 0 : i32
    return %c0_i32, %c0_i32_0 : i32, i32
  }
  func.func @transform_2(%arg0: i32) -> (i32, i32) {
    %c0_i32 = arith.constant 0 : i32
    %c0_i32_0 = arith.constant 0 : i32
    return %arg0, %c0_i32 : i32, i32
  }
  func.func @transform_3(%arg0: i32) -> (i32, i32) {
    %c0_i32 = arith.constant 0 : i32
    %c0_i32_0 = arith.constant 0 : i32
    return %arg0, %c0_i32 : i32, i32
  }
  func.func @transform_4(%arg0: i32) -> (i32, i32) {
    %c0_i32 = arith.constant 0 : i32
    %c0_i32_0 = arith.constant 0 : i32
    return %arg0, %c0_i32 : i32, i32
  }
  func.func @transform_5(%arg0: i32) -> (i32, i32) {
    %c0_i32 = arith.constant 0 : i32
    %c0_i32_0 = arith.constant 0 : i32
    return %arg0, %c0_i32 : i32, i32
  }
}

</mosaic_0001>

<llo_original>
// kernel: tpu_custom_call.1
$region0: #{tpu_custom_call.1}
  #allocation0 [shape = 'u32[]', space=smem, size = 0x4, offset = 0x4, fixed_abs, tag = 'smem constant byte address 0x4 - core index']
  #allocation1 [shape = 'u32[144,128]{1,0:T(1,128)}', space=vmem, size = 0x12000, scoped, tag = 'internal scratch']
  %s0 = inlined_call_operand.vmem [shape: f32[1,101], index: 0, kind: input, shape index: {}]
  %s1 = inlined_call_operand.vmem [shape: f32[101,65], index: 1, kind: input, shape index: {}]
  %s2 = inlined_call_operand.vmem [shape: f32[16,65], index: 2, kind: input, shape index: {}]
  %s3 = inlined_call_operand.vmem [shape: f32[16,65], index: 3, kind: input, shape index: {}]
  %s4 = inlined_call_operand.hbm [shape: f32[16,65], index: 4, kind: output, shape index: {0}]
  %s5 = inlined_call_operand.hbm [shape: f32[16,65], index: 5, kind: output, shape index: {1}]
  %6 = xla_tuple %s4, %s5
  %s7 = sld [smem:[#allocation0]]
  $region57: #{tpu_custom_call.1} parent=0
    _
  %s9 = ssub.s32 1, %s7
  %s10 = scalar_select 0, %s9, %s7
  $region1: #{tpu_custom_call.1} parent=0
    #allocation2 [shape = 'u8[8192]{0}', space=vmem, size = 0x2000, scoped, tag = 'output window, operand 0']
    #allocation3 [shape = 's32[2]{0}', space=sflag, size = 0x8, scoped, tag = 'scoped memory for tpu_custom_call.1']
    #allocation4 [shape = 'u8[8192]{0}', space=vmem, size = 0x2000, scoped, tag = 'output window, operand 1']
    #allocation5 [shape = 's32[2]{0}', space=sflag, size = 0x8, scoped, tag = 'scoped memory for tpu_custom_call.1']
    %11 = vsyncpa [#allocation3], 0
    %s12 = scalar_lea.sflag [#allocation3], 1
    %13 = vsyncpa %s12, 0
    %14 = vsyncpa [#allocation5], 0
    %s15 = scalar_lea.sflag [#allocation5], 1
    %16 = vsyncpa %s15, 0
    loop: start=0, step=1, limit=4
    $region2: #{tpu_custom_call.1} parent=1 // loop_pre_header
      _
    $region3: #{tpu_custom_call.1} parent=1 // loop_header
      %s18 = sphi 0, %s22
      %p19 = scmp.ge.s32.totalorder %s18, 4
      %s26 = sphi 0, %s26
      %s28 = sphi 0, %s26
      %s29 = sphi 0, %s28
      %s43 = sphi 0, %s29
      %s47 = sphi 0, %s47
      %s49 = sphi 0, %s47
      %s50 = sphi 0, %s49
      %s64 = sphi 0, %s50
      %s70 = sphi 0, %s72
      %s73 = sphi 0, %s70
      %s74 = sphi 0, %s73
      %s90 = sphi 0, %s74
      %s96 = sphi 0, %s98
      %s99 = sphi 0, %s96
      %s100 = sphi 0, %s99
      %s116 = sphi 0, %s100
      %s122 = sphi 0, %s124
      %s125 = sphi 0, %s122
      %s126 = sphi 0, %s125
      %s142 = sphi 0, %s126
      %s148 = sphi 0, %s150
      %s151 = sphi 0, %s148
      %s152 = sphi 0, %s151
      %s168 = sphi 0, %s152
    $region4: #{tpu_custom_call.1} parent=1 // loop_header_branch
      %21 = sbr.rel (%p19) target = $region8
    $region5: #{tpu_custom_call.1} parent=1 // loop_body
      %s23 = ssub.s32 %s18, 1
      %s24 = ssub.s32 %s18, 2
      %s25 = sadd.s32 %s18, 1
      %s27 = sadd.s32 %s26, 1
      %p30 = scmp.eq.s32.totalorder %s18, 1
      %p31 = scmp.ne.s32.totalorder %s26, %s28
      %p32 = scmp.eq.s32.totalorder %s18, 0
      %p33 = por %p31, %p32
      %p34 = scmp.ne.s32.totalorder %s26, %s28
      %p35 = scmp.eq.s32.totalorder %s23, 1
      %p36 = por %p34, %p35
      %p37 = scmp.ne.s32.totalorder %s28, %s29
      %p38 = scmp.eq.s32.totalorder %s23, 0
      %p39 = por %p37, %p38
      %p40 = scmp.ne.s32.totalorder %s28, %s29
      %p41 = scmp.eq.s32.totalorder %s24, 1
      %p42 = por %p40, %p41
      %p44 = scmp.ne.s32.totalorder %s29, %s43
      %p45 = scmp.eq.s32.totalorder %s24, 0
      %p46 = por %p44, %p45
      %s48 = sadd.s32 %s47, 1
      %p51 = scmp.eq.s32.totalorder %s18, 1
      %p52 = scmp.ne.s32.totalorder %s47, %s49
      %p53 = scmp.eq.s32.totalorder %s18, 0
      %p54 = por %p52, %p53
      %p55 = scmp.ne.s32.totalorder %s47, %s49
      %p56 = scmp.eq.s32.totalorder %s23, 1
      %p57 = por %p55, %p56
      %p58 = scmp.ne.s32.totalorder %s49, %s50
      %p59 = scmp.eq.s32.totalorder %s23, 0
      %p60 = por %p58, %p59
      %p61 = scmp.ne.s32.totalorder %s49, %s50
      %p62 = scmp.eq.s32.totalorder %s24, 1
      %p63 = por %p61, %p62
      %p65 = scmp.ne.s32.totalorder %s50, %s64
      %p66 = scmp.eq.s32.totalorder %s24, 0
      %p67 = por %p65, %p66
      %s68 = ssub.s32 %s18, %s25
      %p69 = scmp.eq.s32.totalorder %s68, 0
      %s71 = sadd.s32 %s70, 1
      %s72 = scalar_select %p69, %s70, %s71
      %p75 = pneg %p69
      %p76 = scmp.eq.s32.totalorder %s18, 1
      %p77 = por %p75, %p76
      %p78 = scmp.ne.s32.totalorder %s70, %s73
      %p79 = scmp.eq.s32.totalorder %s18, 0
      %p80 = por %p78, %p79
      %p81 = scmp.ne.s32.totalorder %s70, %s73
      %p82 = scmp.eq.s32.totalorder %s23, 1
      %p83 = por %p81, %p82
      %p84 = scmp.ne.s32.totalorder %s73, %s74
      %p85 = scmp.eq.s32.totalorder %s23, 0
      %p86 = por %p84, %p85
      %p87 = scmp.ne.s32.totalorder %s73, %s74
      %p88 = scmp.eq.s32.totalorder %s24, 1
      %p89 = por %p87, %p88
      %p91 = scmp.ne.s32.totalorder %s74, %s90
      %p92 = scmp.eq.s32.totalorder %s24, 0
      %p93 = por %p91, %p92
      %s94 = ssub.s32 %s18, %s25
      %p95 = scmp.eq.s32.totalorder %s94, 0
      %s97 = sadd.s32 %s96, 1
      %s98 = scalar_select %p95, %s96, %s97
      %p101 = pneg %p95
      %p102 = scmp.eq.s32.totalorder %s18, 1
      %p103 = por %p101, %p102
      %p104 = scmp.ne.s32.totalorder %s96, %s99
      %p105 = scmp.eq.s32.totalorder %s18, 0
      %p106 = por %p104, %p105
      %p107 = scmp.ne.s32.totalorder %s96, %s99
      %p108 = scmp.eq.s32.totalorder %s23, 1
      %p109 = por %p107, %p108
      %p110 = scmp.ne.s32.totalorder %s99, %s100
      %p111 = scmp.eq.s32.totalorder %s23, 0
      %p112 = por %p110, %p111
      %p113 = scmp.ne.s32.totalorder %s99, %s100
      %p114 = scmp.eq.s32.totalorder %s24, 1
      %p115 = por %p113, %p114
      %p117 = scmp.ne.s32.totalorder %s100, %s116
      %p118 = scmp.eq.s32.totalorder %s24, 0
      %p119 = por %p117, %p118
      %s120 = ssub.s32 %s18, %s25
      %p121 = scmp.eq.s32.totalorder %s120, 0
      %s123 = sadd.s32 %s122, 1
      %s124 = scalar_select %p121, %s122, %s123
      %p127 = pneg %p121
      %p128 = scmp.eq.s32.totalorder %s18, 1
      %p129 = por %p127, %p128
      %p130 = scmp.ne.s32.totalorder %s122, %s125
      %p131 = scmp.eq.s32.totalorder %s18, 0
      %p132 = por %p130, %p131
      %p133 = scmp.ne.s32.totalorder %s122, %s125
      %p134 = scmp.eq.s32.totalorder %s23, 1
      %p135 = por %p133, %p134
      %p136 = scmp.ne.s32.totalorder %s125, %s126
      %p137 = scmp.eq.s32.totalorder %s23, 0
      %p138 = por %p136, %p137
      %p139 = scmp.ne.s32.totalorder %s125, %s126
      %p140 = scmp.eq.s32.totalorder %s24, 1
      %p141 = por %p139, %p140
      %p143 = scmp.ne.s32.totalorder %s126, %s142
      %p144 = scmp.eq.s32.totalorder %s24, 0
      %p145 = por %p143, %p144
      %s146 = ssub.s32 %s18, %s25
      %p147 = scmp.eq.s32.totalorder %s146, 0
      %s149 = sadd.s32 %s148, 1
      %s150 = scalar_select %p147, %s148, %s149
      %p153 = pneg %p147
      %p154 = scmp.eq.s32.totalorder %s18, 1
      %p155 = por %p153, %p154
      %p156 = scmp.ne.s32.totalorder %s148, %s151
      %p157 = scmp.eq.s32.totalorder %s18, 0
      %p158 = por %p156, %p157
      %p159 = scmp.ne.s32.totalorder %s148, %s151
      %p160 = scmp.eq.s32.totalorder %s23, 1
      %p161 = por %p159, %p160
      %p162 = scmp.ne.s32.totalorder %s151, %s152
      %p163 = scmp.eq.s32.totalorder %s23, 0
      %p164 = por %p162, %p163
      %p165 = scmp.ne.s32.totalorder %s151, %s152
      %p166 = scmp.eq.s32.totalorder %s24, 1
      %p167 = por %p165, %p166
      %p169 = scmp.ne.s32.totalorder %s152, %s168
      %p170 = scmp.eq.s32.totalorder %s24, 0
      %p171 = por %p169, %p170
      %p172 = scmp.le.s32.totalorder 1, %s18
      %p173 = scmp.lt.s32.totalorder %s18, 3
      %p174 = pnand %p172, %p173
      %p175 = pneg %p174
      // Predicated region
      $region9: #{tpu_custom_call.1} parent=5 // pred_check
        _
      $region10: #{tpu_custom_call.1} parent=5 // pred_check_branch
        %177 = sbr.rel (%p174) target = $region12
      $region11: #{tpu_custom_call.1} parent=5 // pred_region
        %s178 = ssub.s32 %s18, 1
        // Predicated region
        $region13: #{tpu_custom_call.1} parent=11 // pred_check
          %p179 = pneg %p39
        $region14: #{tpu_custom_call.1} parent=11 // pred_check_branch
          %181 = sbr.rel (%p179) target = $region16
        $region15: #{tpu_custom_call.1} parent=11 // pred_region
          _
        $region16: #{tpu_custom_call.1} parent=11 // pred_fallthru
          _
        // Predicated region
        $region17: #{tpu_custom_call.1} parent=11 // pred_check
          %p182 = pneg %p60
        $region18: #{tpu_custom_call.1} parent=11 // pred_check_branch
          %184 = sbr.rel (%p182) target = $region20
        $region19: #{tpu_custom_call.1} parent=11 // pred_region
          _
        $region20: #{tpu_custom_call.1} parent=11 // pred_fallthru
          _
      $region12: #{tpu_custom_call.1} parent=5 // pred_fallthru
        _
      %p185 = scmp.lt.s32.totalorder %s18, 2
      // Predicated region
      $region21: #{tpu_custom_call.1} parent=5 // pred_check
        %p186 = pneg %p185
      $region22: #{tpu_custom_call.1} parent=5 // pred_check_branch
        %188 = sbr.rel (%p186) target = $region24
      $region23: #{tpu_custom_call.1} parent=5 // pred_region
        // Predicated region
        $region25: #{tpu_custom_call.1} parent=23 // pred_check
          %p189 = pneg %p80
        $region26: #{tpu_custom_call.1} parent=23 // pred_check_branch
          %191 = sbr.rel (%p189) target = $region28
        $region27: #{tpu_custom_call.1} parent=23 // pred_region
          %p192 = scmp.lt.s32.totalorder %s18, 1
          %s193 = scalar_select %p192, %s18, 1
          %s194 = smul.addr %s193, 8
          %s195 = scalar_lea.vmem %s2, %s194
        $region28: #{tpu_custom_call.1} parent=23 // pred_fallthru
          _
        // Predicated region
        $region29: #{tpu_custom_call.1} parent=23 // pred_check
          %p196 = pneg %p106
        $region30: #{tpu_custom_call.1} parent=23 // pred_check_branch
          %198 = sbr.rel (%p196) target = $region32
        $region31: #{tpu_custom_call.1} parent=23 // pred_region
          %p199 = scmp.lt.s32.totalorder %s18, 1
          %s200 = scalar_select %p199, %s18, 1
          %s201 = smul.addr %s200, 8
          %s202 = scalar_lea.vmem %s3, %s201
        $region32: #{tpu_custom_call.1} parent=23 // pred_fallthru
          _
      $region24: #{tpu_custom_call.1} parent=5 // pred_fallthru
        _
      %p203 = scmp.le.s32.totalorder 1, %s18
      %p204 = scmp.lt.s32.totalorder %s18, 3
      %p205 = pnand %p203, %p204
      %p206 = pneg %p205
      // Predicated region
      $region33: #{tpu_custom_call.1} parent=5 // pred_check
        _
      $region34: #{tpu_custom_call.1} parent=5 // pred_check_branch
        %208 = sbr.rel (%p205) target = $region36
      $region35: #{tpu_custom_call.1} parent=5 // pred_region
        %s209 = ssub.s32 %s18, 1
        %p210 = pneg %p39
        %p211 = pneg %p36
        %p212 = pneg %p60
        %p213 = pneg %p57
        %p214 = scmp.lt.s32.totalorder %s23, 1
        %s215 = scalar_select %p214, %s23, 1
        %s216 = smul.addr %s215, 8
        %s217 = scalar_lea.vmem %s2, %s216
        %p218 = pneg %p86
        %p219 = pneg %p83
        %p220 = scmp.lt.s32.totalorder %s23, 1
        %s221 = scalar_select %p220, %s23, 1
        %s222 = smul.addr %s221, 8
        %s223 = scalar_lea.vmem %s3, %s222
        %p224 = pneg %p112
        %p225 = pneg %p109
        %p226 = pneg %p138
        %p227 = pneg %p135
        %s228 = sand.u32 %s125, 1
        %s229 = scalar_lea.sflag [#allocation3], %s228
        %s230 = sand.u32 %s125, 1
        %s231 = smul.addr %s230, 8
        %s232 = scalar_lea.vmem [#allocation2], %s231
        %p233 = pneg %p164
        %p234 = pneg %p161
        %s235 = sand.u32 %s151, 1
        %s236 = scalar_lea.sflag [#allocation5], %s235
        %s237 = sand.u32 %s151, 1
        %s238 = smul.addr %s237, 8
        %s239 = scalar_lea.vmem [#allocation4], %s238
        %p240 = scmp.lt.s32.totalorder %s23, 1
        %s241 = scalar_select %p240, %s23, 1
        %s242 = smul.addr %s241, 8
        %s243 = scalar_lea.vmem %s2, %s242
        %p244 = scmp.lt.s32.totalorder %s23, 1
        %s245 = scalar_select %p244, %s23, 1
        %s246 = smul.addr %s245, 8
        %s247 = scalar_lea.vmem %s3, %s246
        %v248 = vld [vmem:[%s0] sm:$0x1]
        %v249 = vld [vmem:[%s1] sm:$0xff]
        %v250 = vld [vmem:[%s1 + $0x8] sm:$0xff]
        %v251 = vld [vmem:[%s1 + $0x10] sm:$0xff]
        %v252 = vld [vmem:[%s1 + $0x18] sm:$0xff]
        %v253 = vld [vmem:[%s1 + $0x20] sm:$0xff]
        %v254 = vld [vmem:[%s1 + $0x28] sm:$0xff]
        %v255 = vld [vmem:[%s1 + $0x30] sm:$0xff]
        %v256 = vld [vmem:[%s1 + $0x38] sm:$0xff]
        %v257 = vld [vmem:[%s1 + $0x40] sm:$0xff]
        %v258 = vld [vmem:[%s1 + $0x48] sm:$0xff]
        %v259 = vld [vmem:[%s1 + $0x50] sm:$0xff]
        %v260 = vld [vmem:[%s1 + $0x58] sm:$0xff]
        %v261 = vld [vmem:[%s1 + $0x60] sm:$0x1f]
        %vm262 = vcmask 826368
        %v264 = vsel %vm262, %v248, 0
        %vm266 = vcmask 1044480
        %v268 = vsel %vm266, %v261, 0
        %270 = vmatprep.subr.mxu0 0.0
        %271 = vmatpush1.msra.mxu0 %v249
        %272 = vmatprep.subr.mxu0 0.0
        %273 = vmatpush1.msra.mxu0 %v250
        %274 = vmatprep.subr.mxu0 0.0
        %275 = vmatpush1.msra.mxu0 %v251
        %276 = vmatprep.subr.mxu0 0.0
        %277 = vmatpush1.msra.mxu0 %v252
        %278 = vmatprep.subr.mxu0 0.0
        %279 = vmatpush1.msra.mxu0 %v253
        %280 = vmatprep.subr.mxu0 0.0
        %281 = vmatpush1.msra.mxu0 %v254
        %282 = vmatprep.subr.mxu0 0.0
        %283 = vmatpush1.msra.mxu0 %v255
        %284 = vmatprep.subr.mxu0 0.0
        %285 = vmatpush1.msra.mxu0 %v256
        %286 = vmatprep.subr.mxu0 0.0
        %287 = vmatpush1.msra.mxu0 %v257
        %288 = vmatprep.subr.mxu0 0.0
        %289 = vmatpush1.msra.mxu0 %v258
        %290 = vmatprep.subr.mxu0 0.0
        %291 = vmatpush1.msra.mxu0 %v259
        %292 = vmatprep.subr.mxu0 0.0
        %293 = vmatpush1.msra.mxu0 %v260
        %294 = vmatprep.subr.mxu0 0.0
        %295 = vmatpush1.msra.mxu0 %v268
        %296 = vmatprep.subr.mxu0 0.0
        %297 = vmatpush1.msra.mxu0 0.0
        %298 = vmatprep.subr.mxu0 0.0
        %299 = vmatpush1.msra.mxu0 0.0
        %300 = vmatprep.subr.mxu0 0.0
        %301 = vmatpush1.msra.mxu0 0.0
        %302 = vmatprep.subr.mxu0 0.0
        %303 = vmatpush1.msra.mxu0 0.0
        %304 = vmatprep.subr.mxu0 0.0
        %305 = vmatpush1.msra.mxu0 0.0
        %306 = vmatprep.subr.mxu0 0.0
        %307 = vmatpush1.msra.mxu0 0.0
        %308 = vmatprep.subr.mxu0 0.0
        %309 = vmatpush1.msra.mxu0 0.0
        %310 = vmatprep.subr.mxu0 0.0
        %311 = vmatpush1.msra.mxu0 0.0
        %312 = vmatprep.subr.mxu0 0.0
        %313 = vmatpush1.msra.mxu0 0.0
        %314 = vmatprep.subr.mxu0 0.0
        %315 = vmatpush1.msra.mxu0 0.0
        %316 = vmatprep.subr.mxu0 0.0
        %317 = vmatpush1.msra.mxu0 0.0
        %318 = vmatprep.subr.mxu0 0.0
        %319 = vmatpush1.msra.mxu0 0.0
        %320 = vmatprep.subr.mxu0 0.0
        %321 = vmatpush1.msra.mxu0 0.0
        %322 = vmatprep.subr.mxu0 0.0
        %323 = vmatpush1.msra.mxu0 0.0
        %324 = vmatprep.subr.mxu0 0.0
        %325 = vmatpush1.msra.mxu0 0.0
        %326 = vmatprep.subr.mxu0 0.0
        %327 = vmatpush1.msra.mxu0 0.0
        %328 = vmatprep.subr.mxu0 0.0
        %329 = vmatpush1.msra.mxu0 0.0
        %330 = vmatprep.subr.mxu0 0.0
        %331 = vmatpush1.msra.mxu0 0.0
        %332 = vmatprep.subr.mxu0 0.0
        %333 = vmatpush1.msra.mxu0 0.0
        %334 = vmatprep.mubr.f32.mxu0 0.0
        %335 = vmatmul.mubr.f32.gmra.mrb[0].mxu0 %v264
        %v336 = vpop.f32.mrb[0].mxu0
        %v337 = vadd.f32 0.0, %v336
        %v338 = vpop.f32.mrb[0].mxu0
        %339 = vdwg.mxu0
        %v340 = vld [vmem:[%s243] sm:$0xff]
        %v341 = vlaneseq
        %v342 = vshrl.u32 %v341, 7
        %v343 = vsub.s32 0, %v342
        %v344 = vrot.slane %v337, %v343
        %v345 = vmul.f32 %v340, %v344
        %vm346 = vcmask 531456
        %347 = vst.msk [vmem:[%s232] sm:$0xff] %vm346, %v345
        %v348 = vld [vmem:[%s247] sm:$0xff]
        %v349 = vmul.f32 %v348, %v344
        %350 = vst.msk [vmem:[%s239] sm:$0xff] %vm346, %v349
        %s351 = sand.u32 %s125, 1
        %s352 = scalar_lea.sflag [#allocation3], %s351
        %s353 = sand.u32 %s125, 1
        %s354 = smul.addr %s353, 8
        %s355 = scalar_lea.vmem [#allocation2], %s354
        %s356 = sand.u32 %s151, 1
        %s357 = scalar_lea.sflag [#allocation5], %s356
        %s358 = sand.u32 %s151, 1
        %s359 = smul.addr %s358, 8
        %s360 = scalar_lea.vmem [#allocation4], %s359
        // Predicated region
        $region37: #{tpu_custom_call.1} parent=35 // pred_check
          %p361 = pneg %p135
        $region38: #{tpu_custom_call.1} parent=35 // pred_check_branch
          %363 = sbr.rel (%p361) target = $region40
        $region39: #{tpu_custom_call.1} parent=35 // pred_region
          %s365 = ssub.s32 128, 128
          %366 = vsyncadd %s352, %s365
          %s367 = smul.addr %s23, 128
          %s368 = scalar_lea.hbm %s4, %s367
          %s370 = sshll.u32 %s355, 4
          %s371 = int_to_ptr.vmem [resolvable:$true] %s370
          %373 = dma.vmem_to_hbm [thread:$0]  %s371, 128, %s368, %s352
        $region40: #{tpu_custom_call.1} parent=35 // pred_fallthru
          _
        // Predicated region
        $region41: #{tpu_custom_call.1} parent=35 // pred_check
          %p374 = pneg %p161
        $region42: #{tpu_custom_call.1} parent=35 // pred_check_branch
          %376 = sbr.rel (%p374) target = $region44
        $region43: #{tpu_custom_call.1} parent=35 // pred_region
          %s378 = ssub.s32 128, 128
          %379 = vsyncadd %s357, %s378
          %s380 = smul.addr %s23, 128
          %s381 = scalar_lea.hbm %s5, %s380
          %s383 = sshll.u32 %s360, 4
          %s384 = int_to_ptr.vmem [resolvable:$true] %s383
          %386 = dma.vmem_to_hbm [thread:$0]  %s384, 128, %s381, %s357
        $region44: #{tpu_custom_call.1} parent=35 // pred_fallthru
          _
      $region36: #{tpu_custom_call.1} parent=5 // pred_fallthru
        _
      %p387 = scmp.le.s32.totalorder 2, %s18
      // Predicated region
      $region45: #{tpu_custom_call.1} parent=5 // pred_check
        %p388 = pneg %p387
      $region46: #{tpu_custom_call.1} parent=5 // pred_check_branch
        %390 = sbr.rel (%p388) target = $region48
      $region47: #{tpu_custom_call.1} parent=5 // pred_region
        %s391 = ssub.s32 %s18, 2
        // Predicated region
        $region49: #{tpu_custom_call.1} parent=47 // pred_check
          %p392 = pneg %p141
        $region50: #{tpu_custom_call.1} parent=47 // pred_check_branch
          %394 = sbr.rel (%p392) target = $region52
        $region51: #{tpu_custom_call.1} parent=47 // pred_region
          %s395 = sand.u32 %s126, 1
          %s396 = scalar_lea.sflag [#allocation3], %s395
          %s397 = sand.u32 %s126, 1
          %s398 = smul.addr %s397, 8
          %s399 = scalar_lea.vmem [#allocation2], %s398
          %400 = dma.done %s396, 128
        $region52: #{tpu_custom_call.1} parent=47 // pred_fallthru
          _
        // Predicated region
        $region53: #{tpu_custom_call.1} parent=47 // pred_check
          %p401 = pneg %p167
        $region54: #{tpu_custom_call.1} parent=47 // pred_check_branch
          %403 = sbr.rel (%p401) target = $region56
        $region55: #{tpu_custom_call.1} parent=47 // pred_region
          %s404 = sand.u32 %s152, 1
          %s405 = scalar_lea.sflag [#allocation5], %s404
          %s406 = sand.u32 %s152, 1
          %s407 = smul.addr %s406, 8
          %s408 = scalar_lea.vmem [#allocation4], %s407
          %409 = dma.done %s405, 128
        $region56: #{tpu_custom_call.1} parent=47 // pred_fallthru
          _
      $region48: #{tpu_custom_call.1} parent=5 // pred_fallthru
        _
    $region6: #{tpu_custom_call.1} parent=1 // loop_footer
      %s22 = sadd.s32 1, %s18
    $region7: #{tpu_custom_call.1} parent=1 // loop_footer_branch
      %17 = sbr.rel target = $region3
    $region8: #{tpu_custom_call.1} parent=1 // loop_exit
      _
    %410 = vsyncpa [#allocation3], 1
    %s411 = scalar_lea.sflag [#allocation3], 1
    %412 = vsyncpa %s411, 1
    %413 = vsyncpa [#allocation5], 1
    %s414 = scalar_lea.sflag [#allocation5], 1
    %415 = vsyncpa %s414, 1

</llo_original>
